<compile_context>
chip_gen: v7x
topology: tpu7x:2x2x1
jax: 0.10.0
libtpu: 0.0.40
codegen_flags: <defaults>
</compile_context>

<pallas_src>
import functools

import jax
import jax.numpy as jnp
from jax.experimental import pallas as pl
from jax.experimental.pallas import tpu as pltpu


def _round_up(x, m):
    return ((x + m - 1) // m) * m


def _patch_embed_kernel(patches_ref, w_ref, b_ref, out_ref):
    # patches_ref: (TM, Kp)   bf16 flattened-patch tile (marches down M)
    # w_ref:       (Kp, Ep)   bf16 projection weight (constant block -> DMA'd once)
    # b_ref:       (1,  Ep)   f32 bias (constant block -> DMA'd once)
    # out_ref:     (TM, Ep)   output tile (lane-dense: Ep is a multiple of 128)
    acc = jnp.dot(patches_ref[...], w_ref[...],
                  preferred_element_type=jnp.float32)        # MXU, f32 accumulate
    out_ref[...] = (acc + b_ref[...]).astype(out_ref.dtype)  # f32 bias, cast on store


def prepare_proj_params(weight, bias):
    """Reshape/transpose/cast/pad the static conv parameters.

    weight: (E, C, p, p) f32 (PyTorch Conv2d layout), bias: (E,) f32.
    Returns (w_mat (Kp, Ep) bf16, b_mat (1, Ep) f32).  Static across forward
    passes — hoist/cache the result instead of recomputing per call.
    """
    e, c, p, _ = weight.shape
    k = c * p * p
    k_pad = _round_up(k, 128)
    e_pad = _round_up(e, 128)
    w_mat = weight.reshape(e, k).T.astype(jnp.bfloat16)       # (K, E)
    if (k_pad != k) or (e_pad != e):
        w_mat = jnp.pad(w_mat, ((0, k_pad - k), (0, e_pad - e)))
    b_mat = bias.reshape(1, e).astype(jnp.float32)
    if e_pad != e:
        b_mat = jnp.pad(b_mat, ((0, 0), (0, e_pad - e)))
    return w_mat, b_mat


def patch_embedding(x, weight, bias, patch_size, *, tm_max=1024, out_dtype=None,
                    vmem_budget_bytes=36 * 1024 * 1024):
    """Equivalent of PatchEmbedding.forward.

    x:      (N, C, H, W)  float32, NCHW
    weight: (E, C, p, p)  float32  (PyTorch Conv2d weight layout)
    bias:   (E,)          float32
    returns (N, n_patches, E) in out_dtype (default: x.dtype, i.e. module semantics)
    """
    n, c, h, w = x.shape
    e = weight.shape[0]
    p = patch_size
    hp, wp = h // p, w // p
    n_patches = hp * wp
    k = c * p * p
    m = n * n_patches
    k_pad = _round_up(k, 128)
    e_pad = _round_up(e, 128)
    out_dtype = x.dtype if out_dtype is None else out_dtype
    out_bytes = jnp.dtype(out_dtype).itemsize

    # --- glue: extract non-overlapping patches, flatten, cast to bf16, pad K ---
    # K-axis order (c, a, b) matches weight.reshape(E, C*p*p).
    # TODO(synk): fold this im2col regrouping into the kernel to avoid one HBM
    # round-trip of the (M, K) patch matrix.
    xp = x.reshape(n, c, hp, p, wp, p)
    xp = jnp.transpose(xp, (0, 2, 4, 1, 3, 5))             # (N, hp, wp, C, p, p)
    patches = xp.reshape(m, k).astype(jnp.bfloat16)         # (M, K) bf16 operands
    if k_pad != k:
        # Zero-padding the contraction dim is correctness-preserving and (under
        # jit) fuses into the transpose/cast copy above.
        patches = jnp.pad(patches, ((0, 0), (0, k_pad - k)))

    w_mat, b_mat = prepare_proj_params(weight, bias)        # cacheable across calls

    # --- tiling: full-E tile (weight truly resident), VMEM-budgeted TM ---
    # Double-buffered footprint: 2*(weight + bias) is fixed, 2*(patch row + out row)
    # scales with TM.  ViT-scale weights (K,E <= ~2048) fit comfortably.
    fixed = 2 * (k_pad * e_pad * 2 + e_pad * 4)
    per_row = 2 * (k_pad * 2 + e_pad * out_bytes)
    tm = max(16, min(tm_max, (vmem_budget_bytes - fixed) // per_row))
    tm = (tm // 16) * 16                                    # bf16 sublane pack
    tm = min(tm, _round_up(m, 16))
    grid = (pl.cdiv(m, tm),)                                # partial last block OK

    footprint = fixed + tm * per_row
    # Raise the scoped-VMEM cap (v5e default is 16 MiB) but stay well under v7x's
    # 64 MiB physical VMEM.
    vmem_limit = int(min(max(footprint + (8 << 20), 32 << 20), 48 << 20))

    cost = pl.CostEstimate(
        flops=2 * m * k * e,
        transcendentals=0,
        bytes_accessed=(m * k_pad * 2 + k_pad * e_pad * 2 + e_pad * 4
                        + m * e_pad * out_bytes),
    )

    out = pl.pallas_call(
        _patch_embed_kernel,
        out_shape=jax.ShapeDtypeStruct((m, e_pad), out_dtype),
        grid=grid,
        in_specs=[
            # patches tile: marches down M, full (padded) K in one block
            pl.BlockSpec((tm, k_pad), lambda i: (i, 0)),
            # weight: block index constant over the whole grid -> DMA'd once,
            # VMEM-resident for every M tile
            pl.BlockSpec((k_pad, e_pad), lambda i: (0, 0)),
            # bias: same — constant block
            pl.BlockSpec((1, e_pad), lambda i: (0, 0)),
        ],
        out_specs=pl.BlockSpec((tm, e_pad), lambda i: (i, 0)),
        compiler_params=pltpu.CompilerParams(
            dimension_semantics=("parallel",),              # megacore shard on v7x
            vmem_limit_bytes=vmem_limit),
        cost_estimate=cost,
    )(patches, w_mat, b_mat)

    # strip E padding, reshape to (N, n_patches, E)
    return out[:, :e].reshape(n, n_patches, e)


if __name__ == "__main__":
    # Small shapes consistent with the module.
    batch = 2
    in_chans = 4
    img_size = 16
    patch_size = 4
    embed_dim = 32

    key = jax.random.PRNGKey(0)
    kx, kw, kb = jax.random.split(key, 3)

    x = jax.random.normal(kx, (batch, in_chans, img_size, img_size), jnp.float32)

    # Deterministic parameter init (Conv2d weight/bias shapes from __init__).
    fan_in = in_chans * patch_size * patch_size
    bound = 1.0 / jnp.sqrt(fan_in)
    weight = jax.random.uniform(
        kw, (embed_dim, in_chans, patch_size, patch_size),
        jnp.float32, minval=-bound, maxval=bound)
    bias = jax.random.uniform(
        kb, (embed_dim,), jnp.float32, minval=-bound, maxval=bound)

    # jit so the im2col transpose / K-pad / bf16 cast fuse around the pallas_call.
    fwd = jax.jit(patch_embedding, static_argnums=(3,))
    out = jax.block_until_ready(fwd(x, weight, bias, patch_size))

    # References.
    n_patches = (img_size // patch_size) ** 2
    hp = img_size // patch_size
    xp = x.reshape(batch, in_chans, hp, patch_size, hp, patch_size)
    xp = jnp.transpose(xp, (0, 2, 4, 1, 3, 5)).reshape(batch * n_patches, fan_in)
    w_mat = weight.reshape(embed_dim, fan_in).T

    # Exact-path reference: bf16 operands, f32 accumulation + f32 bias (kernel math).
    ref_bf16 = (jnp.dot(xp.astype(jnp.bfloat16), w_mat.astype(jnp.bfloat16),
                        preferred_element_type=jnp.float32) + bias
                ).reshape(batch, n_patches, embed_dim)
    # Full-precision reference (module semantics).
    ref_f32 = (xp @ w_mat + bias).reshape(batch, n_patches, embed_dim)

    assert out.shape == (batch, n_patches, embed_dim)
    assert out.dtype == x.dtype
    assert jnp.allclose(out, ref_bf16, atol=1e-3, rtol=1e-3)
    assert jnp.allclose(out, ref_f32, atol=5e-2, rtol=5e-2)

    print("KERNEL_OK")
</pallas_src>

<mosaic_0001>
module attributes {stable_mosaic.version = 11 : i64} {
  func.func @_patch_embed_kernel(%arg0: i32, %arg1: memref<32x128xbf16, #tpu.memory_space<vmem>>, %arg2: memref<128x128xbf16, #tpu.memory_space<vmem>>, %arg3: memref<1x128xf32, #tpu.memory_space<vmem>>, %arg4: memref<32x128xf32, #tpu.memory_space<vmem>>) attributes {dimension_semantics = [#tpu.dimension_semantics<parallel>], iteration_bounds = array<i64: 1>, scalar_prefetch = 0 : i64, scratch_operands = 0 : i64, tpu.core_type = #tpu.core_type<tc>, window_params = [{transform_indices = @transform_0, window_bounds = array<i64: 32, 128>}, {pipeline_mode = #tpu.pipeline_mode<synchronous>, transform_indices = @transform_1, window_bounds = array<i64: 128, 128>}, {pipeline_mode = #tpu.pipeline_mode<synchronous>, transform_indices = @transform_2, window_bounds = array<i64: 1, 128>}, {transform_indices = @transform_3, window_bounds = array<i64: 32, 128>}]} {
    %c0 = arith.constant 0 : index
    %c0_0 = arith.constant 0 : index
    %0 = vector.load %arg1[%c0, %c0_0] : memref<32x128xbf16, #tpu.memory_space<vmem>>, vector<32x128xbf16>
    %c0_1 = arith.constant 0 : index
    %c0_2 = arith.constant 0 : index
    %1 = vector.load %arg2[%c0_1, %c0_2] : memref<128x128xbf16, #tpu.memory_space<vmem>>, vector<128x128xbf16>
    %cst = arith.constant dense<0.000000e+00> : vector<32x128xf32>
    %2 = tpu.matmul %0, %1, %cst {dimension_numbers = #tpu.dot_dimension_numbers<[1], [0], [0], [1], [0, 0, 1, 1], [], []>} : vector<32x128xbf16>, vector<128x128xbf16>, vector<32x128xf32> -> vector<32x128xf32>
    %c0_3 = arith.constant 0 : index
    %c0_4 = arith.constant 0 : index
    %3 = vector.load %arg3[%c0_3, %c0_4] : memref<1x128xf32, #tpu.memory_space<vmem>>, vector<1x128xf32>
    %4 = vector.broadcast %3 : vector<1x128xf32> to vector<32x128xf32>
    %5 = arith.addf %2, %4 : vector<32x128xf32>
    %c0_5 = arith.constant 0 : index
    %c0_6 = arith.constant 0 : index
    %6 = vector.load %arg4[%c0_5, %c0_6] : memref<32x128xf32, #tpu.memory_space<vmem>>, vector<32x128xf32>
    tpu.vector_store %arg4[%c0_5, %c0_6], %5 {strides = array<i32>} : memref<32x128xf32, #tpu.memory_space<vmem>>, vector<32x128xf32>,
    return
  }
  func.func @transform_0(%arg0: i32) -> (i32, i32) {
    %c0_i32 = arith.constant 0 : i32
    %c0_i32_0 = arith.constant 0 : i32
    return %arg0, %c0_i32 : i32, i32
  }
  func.func @transform_1(%arg0: i32) -> (i32, i32) {
    %c0_i32 = arith.constant 0 : i32
    %c0_i32_0 = arith.constant 0 : i32
    %c0_i32_1 = arith.constant 0 : i32
    return %c0_i32, %c0_i32_0 : i32, i32
  }
  func.func @transform_2(%arg0: i32) -> (i32, i32) {
    %c0_i32 = arith.constant 0 : i32
    %c0_i32_0 = arith.constant 0 : i32
    %c0_i32_1 = arith.constant 0 : i32
    return %c0_i32, %c0_i32_0 : i32, i32
  }
  func.func @transform_3(%arg0: i32) -> (i32, i32) {
    %c0_i32 = arith.constant 0 : i32
    %c0_i32_0 = arith.constant 0 : i32
    return %arg0, %c0_i32 : i32, i32
  }
}

</mosaic_0001>

<llo_original>
// kernel: patch_embedding.1
$region0: #{patch_embedding.1}
  #allocation0 [shape = 'u32[]', space=smem, size = 0x4, offset = 0x4, fixed_abs, tag = 'smem constant byte address 0x4 - core index']
  #allocation1 [shape = 'u32[144,128]{1,0:T(1,128)}', space=vmem, size = 0x12000, scoped, tag = 'internal scratch']
  %s0 = inlined_call_operand.vmem [shape: bf16[32,128], index: 0, kind: input, shape index: {}]
  %s1 = inlined_call_operand.vmem [shape: bf16[128,128], index: 1, kind: input, shape index: {}]
  %s2 = inlined_call_operand.vmem [shape: f32[1,128], index: 2, kind: input, shape index: {}]
  %s3 = inlined_call_operand.hbm [shape: f32[32,128], index: 3, kind: output, shape index: {}]
  %s4 = sld [smem:[#allocation0]]
  $region22: #{patch_embedding.1} parent=0
    _
  %s6 = ssub.s32 1, %s4
  %s7 = scalar_select 0, %s6, %s4
  $region1: #{patch_embedding.1} parent=0
    #allocation2 [shape = 'u8[16384]{0}', space=vmem, size = 0x4000, scoped, tag = 'output window, operand 0, single buffered']
    #allocation3 [shape = 's32[1]{0}', space=sflag, size = 0x4, scoped, tag = 'scoped memory for patch_embedding.1']
    %8 = vsyncpa [#allocation3], 0
    // Predicated region
    $region2: #{patch_embedding.1} parent=1 // pred_check
      _
    $region3: #{patch_embedding.1} parent=1 // pred_check_branch
      %10 = sbr.rel (0) target = $region5
    $region4: #{patch_embedding.1} parent=1 // pred_region
      _
    $region5: #{patch_embedding.1} parent=1 // pred_fallthru
      _
    // Predicated region
    $region6: #{patch_embedding.1} parent=1 // pred_check
      _
    $region7: #{patch_embedding.1} parent=1 // pred_check_branch
      %12 = sbr.rel (0) target = $region9
    $region8: #{patch_embedding.1} parent=1 // pred_region
      _
    $region9: #{patch_embedding.1} parent=1 // pred_fallthru
      _
    // Predicated region
    $region10: #{patch_embedding.1} parent=1 // pred_check
      _
    $region11: #{patch_embedding.1} parent=1 // pred_check_branch
      %14 = sbr.rel (0) target = $region13
    $region12: #{patch_embedding.1} parent=1 // pred_region
      _
    $region13: #{patch_embedding.1} parent=1 // pred_fallthru
      _
    %v16 = vld [vmem:[%s0] sm:$0xf]
    %v17 = vld [vmem:[%s0 + $0x4] sm:$0xf]
    %v18 = vld [vmem:[%s0 + $0x8] sm:$0xf]
    %v19 = vld [vmem:[%s0 + $0xc] sm:$0xf]
    %v20 = vld [vmem:[%s1] sm:$0xf]
    %v21 = vld [vmem:[%s1 + $0x4] sm:$0xf]
    %v22 = vld [vmem:[%s1 + $0x8] sm:$0xf]
    %v23 = vld [vmem:[%s1 + $0xc] sm:$0xf]
    %v24 = vld [vmem:[%s1 + $0x10] sm:$0xf]
    %v25 = vld [vmem:[%s1 + $0x14] sm:$0xf]
    %v26 = vld [vmem:[%s1 + $0x18] sm:$0xf]
    %v27 = vld [vmem:[%s1 + $0x1c] sm:$0xf]
    %v28 = vld [vmem:[%s1 + $0x20] sm:$0xf]
    %v29 = vld [vmem:[%s1 + $0x24] sm:$0xf]
    %v30 = vld [vmem:[%s1 + $0x28] sm:$0xf]
    %v31 = vld [vmem:[%s1 + $0x2c] sm:$0xf]
    %v32 = vld [vmem:[%s1 + $0x30] sm:$0xf]
    %v33 = vld [vmem:[%s1 + $0x34] sm:$0xf]
    %v34 = vld [vmem:[%s1 + $0x38] sm:$0xf]
    %v35 = vld [vmem:[%s1 + $0x3c] sm:$0xf]
    %v36 = vld [vmem:[%s2] sm:$0x1]
    %v38 = vlaneseq
    %v39 = vshrl.u32 %v38, 7
    %v40 = vsub.s32 0, %v39
    %v41 = vrot.slane %v36, %v40
    %v47 = vunpack.c.l.b16 %v16
    %v48 = vunpack.c.l.b16 %v17
    %v49 = vunpack.c.l.b16 %v18
    %v50 = vunpack.c.l.b16 %v19
    %v51 = vpack.c.b16 %v48, %v47
    %v52 = vpack.c.b16 %v50, %v49
    %v71 = vunpack.c.l.b16 %v20
    %v72 = vunpack.c.l.b16 %v21
    %v73 = vunpack.c.l.b16 %v22
    %v74 = vunpack.c.l.b16 %v23
    %v75 = vunpack.c.l.b16 %v24
    %v76 = vunpack.c.l.b16 %v25
    %v77 = vunpack.c.l.b16 %v26
    %v78 = vunpack.c.l.b16 %v27
    %v79 = vunpack.c.l.b16 %v28
    %v80 = vunpack.c.l.b16 %v29
    %v81 = vunpack.c.l.b16 %v30
    %v82 = vunpack.c.l.b16 %v31
    %v83 = vunpack.c.l.b16 %v32
    %v84 = vunpack.c.l.b16 %v33
    %v85 = vunpack.c.l.b16 %v34
    %v86 = vunpack.c.l.b16 %v35
    %v87 = vpack.c.b16 %v72, %v71
    %v88 = vpack.c.b16 %v74, %v73
    %v89 = vpack.c.b16 %v76, %v75
    %v90 = vpack.c.b16 %v78, %v77
    %v91 = vpack.c.b16 %v80, %v79
    %v92 = vpack.c.b16 %v82, %v81
    %v93 = vpack.c.b16 %v84, %v83
    %v94 = vpack.c.b16 %v86, %v85
    %103 = vmatprep.subr.bf16.mxu0 0
    %104 = vmatpush1.bf16.msra.mxu0 %v87
    %105 = vmatprep.subr.bf16.mxu0 0
    %106 = vmatpush1.bf16.msra.mxu0 %v88
    %107 = vmatprep.subr.bf16.mxu0 0
    %108 = vmatpush1.bf16.msra.mxu0 %v89
    %109 = vmatprep.subr.bf16.mxu0 0
    %110 = vmatpush1.bf16.msra.mxu0 %v90
    %111 = vmatprep.subr.bf16.mxu0 0
    %112 = vmatpush1.bf16.msra.mxu0 %v91
    %113 = vmatprep.subr.bf16.mxu0 0
    %114 = vmatpush1.bf16.msra.mxu0 %v92
    %115 = vmatprep.subr.bf16.mxu0 0
    %116 = vmatpush1.bf16.msra.mxu0 %v93
    %117 = vmatprep.subr.bf16.mxu0 0
    %118 = vmatpush1.bf16.msra.mxu0 %v94
    %119 = vmatprep.subr.bf16.mxu0 0
    %120 = vmatpush1.bf16.msra.mxu0 0
    %121 = vmatprep.subr.bf16.mxu0 0
    %122 = vmatpush1.bf16.msra.mxu0 0
    %123 = vmatprep.subr.bf16.mxu0 0
    %124 = vmatpush1.bf16.msra.mxu0 0
    %125 = vmatprep.subr.bf16.mxu0 0
    %126 = vmatpush1.bf16.msra.mxu0 0
    %127 = vmatprep.subr.bf16.mxu0 0
    %128 = vmatpush1.bf16.msra.mxu0 0
    %129 = vmatprep.subr.bf16.mxu0 0
    %130 = vmatpush1.bf16.msra.mxu0 0
    %131 = vmatprep.subr.bf16.mxu0 0
    %132 = vmatpush1.bf16.msra.mxu0 0
    %133 = vmatprep.subr.bf16.mxu0 0
    %134 = vmatpush1.bf16.msra.mxu0 0
    %135 = vmatprep.mubr.bf16.mxu0 0
    %136 = vmatmul.mubr.bf16.gmra.mrb[0].mxu0 %v51
    %v137 = vpop.f32.mrb[0].mxu0
    %v138 = vadd.f32 %v41, %v137
    %v139 = vpop.f32.mrb[0].mxu0
    %v140 = vpop.f32.mrb[0].mxu0
    %v141 = vadd.f32 %v41, %v140
    %v142 = vpop.f32.mrb[0].mxu0
    %143 = vmatprep.mubr.bf16.mxu0 0
    %144 = vmatmul.mubr.bf16.gmra.mrb[0].mxu0 %v52
    %v145 = vpop.f32.mrb[0].mxu0
    %v146 = vadd.f32 %v41, %v145
    %v147 = vpop.f32.mrb[0].mxu0
    %v148 = vpop.f32.mrb[0].mxu0
    %v149 = vadd.f32 %v41, %v148
    %v150 = vpop.f32.mrb[0].mxu0
    %151 = vdwg.mxu0
    %152 = vst [vmem:[#allocation2] sm:$0xff] %v138
    %153 = vst [vmem:[#allocation2 + $0x8] sm:$0xff] %v141
    %154 = vst [vmem:[#allocation2 + $0x10] sm:$0xff] %v146
    %155 = vst [vmem:[#allocation2 + $0x18] sm:$0xff] %v149
    // Predicated region
    $region14: #{patch_embedding.1} parent=1 // pred_check
      _
    $region15: #{patch_embedding.1} parent=1 // pred_check_branch
      %157 = sbr.rel (0) target = $region17
    $region16: #{patch_embedding.1} parent=1 // pred_region
      %s159 = ssub.s32 512, 512
      %160 = vsyncadd [#allocation3], %s159
      %s161 = sshll.u32 [#allocation2], 4
      %s162 = int_to_ptr.vmem [resolvable:$true] %s161
      %167 = dma.vmem_to_hbm [thread:$0]  %s162, 512, %s3, [#allocation3], 128, 128, 8
    $region17: #{patch_embedding.1} parent=1 // pred_fallthru
      _
    // Predicated region
    $region18: #{patch_embedding.1} parent=1 // pred_check
      _
    $region19: #{patch_embedding.1} parent=1 // pred_check_branch
      %169 = sbr.rel (0) target = $region21
    $region20: #{patch_embedding.1} parent=1 // pred_region
      %170 = dma.done [#allocation3], 512
    $region21: #{patch_embedding.1} parent=1 // pred_fallthru
      _
    %171 = vsyncpa [#allocation3], 1

</llo_original>
